<compile_context>
chip_gen: v7x
topology: tpu7x:2x2x1
jax: 0.10.0
libtpu: 0.0.40
codegen_flags: <defaults>
</compile_context>

<pallas_src>
import functools

import jax
import jax.numpy as jnp
from jax.experimental import pallas as pl
from jax.experimental.pallas import tpu as pltpu


# ---------------------------------------------------------------------------
# Kernel
# ---------------------------------------------------------------------------
def bay_loss_kernel(prob_ref, dens_ref, out_ref, acc_ref, *, n_valid, row_tile):
    """Grid = (B, kt).  prob_ref: (N_pad, TK), dens_ref: (1, TK),
    acc_ref: (N_pad, 128) f32 resident across the k axis, out_ref: (1, 1, 1)."""
    k = pl.program_id(1)
    lanes = 128

    # Zero the per-batch accumulator at the start of each reduction sweep.
    @pl.when(k == 0)
    def _():
        acc_ref[...] = jnp.zeros_like(acc_ref)

    n_pad, tk = prob_ref.shape
    n_strips = tk // lanes

    # bf16 inputs: multiply in bf16 + single widening add into f32 acc
    # (fewer VALU ops per streamed element).  Otherwise cast to f32 first.
    narrow_mul = (jnp.dtype(prob_ref.dtype) == jnp.dtype(dens_ref.dtype)
                  and jnp.dtype(prob_ref.dtype) == jnp.dtype(jnp.bfloat16))

    # Row-tiled lane-dense accumulation: the live carry is at most
    # (row_tile, 128) f32 = row_tile/8 vregs, so Mosaic never spills acc.
    for r0 in range(0, n_pad, row_tile):
        rows = min(row_tile, n_pad - r0)

        def strip_body(c, acc, _r0=r0, _rows=rows):
            lo = pl.multiple_of(c * lanes, lanes)
            p = prob_ref[pl.ds(_r0, _rows), pl.ds(lo, lanes)]
            d = dens_ref[:, pl.ds(lo, lanes)]
            if narrow_mul:
                prod = (p * d).astype(jnp.float32)
            else:
                prod = p.astype(jnp.float32) * d.astype(jnp.float32)
            return acc + prod

        acc_part = jax.lax.fori_loop(
            0, n_strips, strip_body,
            acc_ref[pl.ds(r0, rows), :],
            unroll=max(1, min(8, n_strips)))
        acc_ref[pl.ds(r0, rows), :] = acc_part

    # Finalize once per batch element: one cross-lane reduce, target, |.|, sum.
    @pl.when(k == pl.num_programs(1) - 1)
    def _():
        pre_count = jnp.sum(acc_ref[...], axis=-1, keepdims=True)      # (N_pad, 1)
        row = jax.lax.broadcasted_iota(jnp.int32, pre_count.shape, 0)
        # Rows >= n_valid (background row when use_bg, plus any padding rows)
        # have target 0; padded prob rows are zero so pre_count there is 0 too.
        target = (row < n_valid).astype(jnp.float32)
        loss_b = jnp.sum(jnp.abs(target - pre_count))
        out_ref[...] = jnp.full(out_ref.shape, loss_b, dtype=out_ref.dtype)


# ---------------------------------------------------------------------------
# Tiling / VMEM budgeting helpers
# ---------------------------------------------------------------------------
def _round_up(x, m):
    return (x + m - 1) // m * m


def _cdiv(a, b):
    return (a + b - 1) // b


def _vmem_capacity_bytes():
    try:
        return int(pltpu.get_tpu_info().vmem_capacity_bytes)
    except Exception:
        return 64 << 20          # conservative (v7x per-TC size)


def _choose_tiling(n_pad, m, itemsize, tk=None):
    """Pick TK (multiple of 128) and the padded reduction length M_pad = kt*TK."""
    m128 = _round_up(max(m, 128), 128)
    cap = _vmem_capacity_bytes()

    if tk is None:
        # Generation-dependent streaming budget: ~24 MiB on 64-MiB parts (v7x),
        # ~80 MiB on 128-MiB parts (v5e/v6e).
        budget = (80 << 20) if cap >= (100 << 20) else (24 << 20)
        acc_bytes = n_pad * 128 * 4
        avail = max(budget - acc_bytes - (1 << 20), 2 << 20)
        # Double-buffered prob block (n_pad rows) + dens block (8 sublanes) per lane.
        per_lane = 2 * (n_pad + 8) * itemsize
        tk = (avail // per_lane) // 128 * 128
        floor = 512 if itemsize >= 4 else 1024       # avoid descriptor-bound DMAs
        tk = max(floor, tk)
    else:
        tk = _round_up(int(tk), 128)

    tk = min(tk, m128)
    kt = _cdiv(m128, tk)
    tk = _round_up(_cdiv(m128, kt), 128)   # balance so the pad overhead is small
    m_pad = kt * tk
    return tk, kt, m_pad, cap


# ---------------------------------------------------------------------------
# Wrapper
# ---------------------------------------------------------------------------
def bay_loss(prob, pre_density, *, use_bg=True, tk=None, row_tile=64):
    """prob: (B, N, M) (f32 or bf16); pre_density: (B, 1, H, W) with H*W == M."""
    B, N, M = prob.shape
    dens = pre_density.reshape(B, 1, -1)
    assert dens.shape == (B, 1, M), (dens.shape, (B, 1, M))
    itemsize = jnp.dtype(prob.dtype).itemsize

    n_valid = (N - 1) if use_bg else N

    # Pad N to a multiple of 8 (sublane) and M to kt * TK (lane / K tiling).
    n_pad = _round_up(N, 8)
    tk, kt, m_pad, cap = _choose_tiling(n_pad, M, itemsize, tk=tk)

    if n_pad != N or m_pad != M:
        prob = jnp.pad(prob, ((0, 0), (0, n_pad - N), (0, m_pad - M)))
    if m_pad != M:
        dens = jnp.pad(dens, ((0, 0), (0, 0), (0, m_pad - M)))

    kernel = functools.partial(bay_loss_kernel, n_valid=n_valid,
                               row_tile=min(row_tile, n_pad))

    # VMEM hint: double-buffered input blocks + accumulator, capped below the
    # physical per-TC VMEM (64 MiB on v7x, 128 MiB on v5e/v6e) with headroom.
    step_bytes = 2 * (n_pad + 8) * tk * itemsize + n_pad * 128 * 4
    vmem_limit = int(min(cap - (8 << 20), max(32 << 20, step_bytes + (8 << 20))))

    per_batch = pl.pallas_call(
        kernel,
        out_shape=jax.ShapeDtypeStruct((B, 1, 1), jnp.float32),
        grid_spec=pltpu.PrefetchScalarGridSpec(
            num_scalar_prefetch=0,
            grid=(B, kt),                              # reduction (k) innermost
            in_specs=[
                # per-(batch, k) prob strip (N_pad, TK), native dtype
                pl.BlockSpec((pl.Squeezed(), n_pad, tk), lambda b, k: (b, 0, k)),
                # per-(batch, k) flattened density strip (1, TK)
                pl.BlockSpec((pl.Squeezed(), 1, tk), lambda b, k: (b, 0, k)),
            ],
            # one tiny per-batch loss block, resident across the k axis
            out_specs=pl.BlockSpec((1, 1, 1), lambda b, k: (b, 0, 0)),
            scratch_shapes=[pltpu.VMEM((n_pad, 128), jnp.float32)],
        ),
        compiler_params=pltpu.CompilerParams(
            dimension_semantics=("parallel", "arbitrary"),
            vmem_limit_bytes=vmem_limit,
        ),
    )(prob, dens)

    return jnp.sum(per_batch) / B


# ---------------------------------------------------------------------------
# Pure-JAX reference (mirrors the PyTorch loop, dense branch)
# ---------------------------------------------------------------------------
def bay_loss_ref(prob, pre_density, *, use_bg=True):
    B, N, M = prob.shape
    dens = pre_density.reshape(B, 1, M).astype(jnp.float32)
    pre_count = jnp.sum(dens * prob.astype(jnp.float32), axis=-1)      # (B, N)
    if use_bg:
        target = jnp.ones((N,), jnp.float32).at[-1].set(0.0)
    else:
        target = jnp.ones((N,), jnp.float32)
    per_b = jnp.sum(jnp.abs(target[None, :] - pre_count), axis=-1)
    return jnp.sum(per_b) / B


if __name__ == "__main__":
    key = jax.random.PRNGKey(0)
    k1, k2, k3, k4 = jax.random.split(key, 4)

    # --- Test 1: standard small shapes, f32, auto TK -----------------------
    B, N, H, W = 2, 8, 16, 16
    M = H * W
    prob = jax.nn.softmax(jax.random.normal(k1, (B, N, M), jnp.float32), axis=-1)
    pre_density = jax.nn.relu(jax.random.normal(k2, (B, 1, H, W), jnp.float32))

    ref = bay_loss_ref(prob, pre_density, use_bg=True)
    out = jax.block_until_ready(bay_loss(prob, pre_density, use_bg=True))
    assert jnp.allclose(out, ref, rtol=1e-5, atol=1e-5), (out, ref)

    # --- Test 2: forced TK=128 to exercise multi-step k accumulation -------
    out_tiled = jax.block_until_ready(bay_loss(prob, pre_density, use_bg=True, tk=128))
    assert jnp.allclose(out_tiled, ref, rtol=1e-5, atol=1e-5), (out_tiled, ref)

    # --- Test 3: ragged shapes (N % 8 != 0, M % 128 != 0), no background ---
    B2, N2, H2, W2 = 2, 13, 15, 13
    prob2 = jax.nn.softmax(
        jax.random.normal(k3, (B2, N2, H2 * W2), jnp.float32), axis=-1)
    dens2 = jax.nn.relu(jax.random.normal(k4, (B2, 1, H2, W2), jnp.float32))
    ref2 = bay_loss_ref(prob2, dens2, use_bg=False)
    out2 = jax.block_until_ready(bay_loss(prob2, dens2, use_bg=False))
    assert jnp.allclose(out2, ref2, rtol=1e-5, atol=1e-5), (out2, ref2)

    # --- Test 4: bf16 inputs (narrow-multiply / widening-add path) ---------
    prob_bf = prob.astype(jnp.bfloat16)
    dens_bf = pre_density.astype(jnp.bfloat16)
    ref_bf = bay_loss_ref(prob_bf, dens_bf, use_bg=True)
    out_bf = jax.block_until_ready(bay_loss(prob_bf, dens_bf, use_bg=True, tk=128))
    assert jnp.allclose(out_bf, ref_bf, rtol=5e-2, atol=5e-2), (out_bf, ref_bf)

    print("KERNEL_OK")
</pallas_src>

<mosaic_0001>
module attributes {stable_mosaic.version = 11 : i64} {
  func.func @bay_loss_kernel(%arg0: i32, %arg1: i32, %arg2: memref<1x8x256xf32, #tpu.memory_space<vmem>>, %arg3: memref<1x1x256xf32, #tpu.memory_space<vmem>>, %arg4: memref<1x1x1xf32, #tpu.memory_space<vmem>>, %arg5: memref<8x128xf32, #tpu.memory_space<vmem>>) attributes {dimension_semantics = [#tpu.dimension_semantics<parallel>, #tpu.dimension_semantics<arbitrary>], iteration_bounds = array<i64: 2, 1>, scalar_prefetch = 0 : i64, scratch_operands = 1 : i64, tpu.core_type = #tpu.core_type<tc>, window_params = [{transform_indices = @transform_0, window_bounds = array<i64: 1, 8, 256>}, {transform_indices = @transform_1, window_bounds = array<i64: 1, 1, 256>}, {transform_indices = @transform_2, window_bounds = array<i64: 1, 1, 1>}]} {
    %c0_i32 = arith.constant 0 : i32
    %0 = arith.cmpi eq, %arg1, %c0_i32 : i32
    %1 = arith.extui %0 : i1 to i32
    %c0_i32_0 = arith.constant 0 : i32
    %2 = arith.cmpi ne, %1, %c0_i32_0 : i32
    scf.if %2 {
      %cst = arith.constant 0.000000e+00 : f32
      %30 = vector.broadcast %cst : f32 to vector<8x128xf32>
      %c0_16 = arith.constant 0 : index
      %c0_17 = arith.constant 0 : index
      %31 = vector.load %arg5[%c0_16, %c0_17] : memref<8x128xf32, #tpu.memory_space<vmem>>, vector<8x128xf32>
      tpu.vector_store %arg5[%c0_16, %c0_17], %30 {strides = array<i32>} : memref<8x128xf32, #tpu.memory_space<vmem>>, vector<8x128xf32>,
    } else {
    }
    %c0 = arith.constant 0 : index
    %c0_1 = arith.constant 0 : index
    %3 = vector.load %arg5[%c0, %c0_1] : memref<8x128xf32, #tpu.memory_space<vmem>>, vector<8x128xf32>
    %c0_i32_2 = arith.constant 0 : i32
    %c128_i32 = arith.constant 128 : i32
    %4 = arith.muli %c0_i32_2, %c128_i32 : i32
    %5 = tpu.assume_multiple %4, 128 : i32
    %c0_3 = arith.constant 0 : index
    %c0_4 = arith.constant 0 : index
    %6 = arith.index_cast %5 : i32 to index
    %7 = vector.load %arg2[%c0_3, %c0_4, %6] : memref<1x8x256xf32, #tpu.memory_space<vmem>>, vector<1x8x128xf32>
    %8 = vector.shape_cast %7 : vector<1x8x128xf32> to vector<8x128xf32>
    %c0_5 = arith.constant 0 : index
    %c0_6 = arith.constant 0 : index
    %9 = arith.index_cast %5 : i32 to index
    %10 = vector.load %arg3[%c0_5, %c0_6, %9] : memref<1x1x256xf32, #tpu.memory_space<vmem>>, vector<1x1x128xf32>
    %11 = vector.shape_cast %10 : vector<1x1x128xf32> to vector<1x128xf32>
    %12 = vector.broadcast %11 : vector<1x128xf32> to vector<8x128xf32>
    %13 = arith.mulf %8, %12 : vector<8x128xf32>
    %14 = arith.addf %3, %13 : vector<8x128xf32>
    %c1_i32 = arith.constant 1 : i32
    %c128_i32_7 = arith.constant 128 : i32
    %15 = arith.muli %c1_i32, %c128_i32_7 : i32
    %16 = tpu.assume_multiple %15, 128 : i32
    %c0_8 = arith.constant 0 : index
    %c0_9 = arith.constant 0 : index
    %17 = arith.index_cast %16 : i32 to index
    %18 = vector.load %arg2[%c0_8, %c0_9, %17] : memref<1x8x256xf32, #tpu.memory_space<vmem>>, vector<1x8x128xf32>
    %19 = vector.shape_cast %18 : vector<1x8x128xf32> to vector<8x128xf32>
    %c0_10 = arith.constant 0 : index
    %c0_11 = arith.constant 0 : index
    %20 = arith.index_cast %16 : i32 to index
    %21 = vector.load %arg3[%c0_10, %c0_11, %20] : memref<1x1x256xf32, #tpu.memory_space<vmem>>, vector<1x1x128xf32>
    %22 = vector.shape_cast %21 : vector<1x1x128xf32> to vector<1x128xf32>
    %23 = vector.broadcast %22 : vector<1x128xf32> to vector<8x128xf32>
    %24 = arith.mulf %19, %23 : vector<8x128xf32>
    %25 = arith.addf %14, %24 : vector<8x128xf32>
    %c2_i32 = arith.constant 2 : i32
    %c0_12 = arith.constant 0 : index
    %c0_13 = arith.constant 0 : index
    %26 = vector.load %arg5[%c0_12, %c0_13] : memref<8x128xf32, #tpu.memory_space<vmem>>, vector<8x128xf32>
    tpu.vector_store %arg5[%c0_12, %c0_13], %25 {strides = array<i32>} : memref<8x128xf32, #tpu.memory_space<vmem>>, vector<8x128xf32>,
    %c0_i32_14 = arith.constant 0 : i32
    %27 = arith.cmpi eq, %arg1, %c0_i32_14 : i32
    %28 = arith.extui %27 : i1 to i32
    %c0_i32_15 = arith.constant 0 : i32
    %29 = arith.cmpi ne, %28, %c0_i32_15 : i32
    scf.if %29 {
      %c0_16 = arith.constant 0 : index
      %c0_17 = arith.constant 0 : index
      %30 = vector.load %arg5[%c0_16, %c0_17] : memref<8x128xf32, #tpu.memory_space<vmem>>, vector<8x128xf32>
      %cst = arith.constant dense<0.000000e+00> : vector<8xf32>
      %31 = vector.multi_reduction <add>, %30, %cst [1] : vector<8x128xf32> to vector<8xf32>
      %32 = vector.shape_cast %31 : vector<8xf32> to vector<8x1xf32>
      %33 = tpu.iota {dimensions = array<i32: 0>} : vector<8x1xi32>
      %c7_i32 = arith.constant 7 : i32
      %34 = vector.broadcast %c7_i32 : i32 to vector<8x1xi32>
      %35 = arith.cmpi slt, %33, %34 : vector<8x1xi32>
      %36 = arith.extui %35 : vector<8x1xi1> to vector<8x1xi32>
      %37 = arith.sitofp %36 : vector<8x1xi32> to vector<8x1xf32>
      %38 = arith.subf %37, %32 : vector<8x1xf32>
      %39 = math.absf %38 : vector<8x1xf32>
      %40 = vector.shape_cast %39 : vector<8x1xf32> to vector<1x8x1xf32>
      %cst_18 = arith.constant dense<0.000000e+00> : vector<1xf32>
      %41 = vector.multi_reduction <add>, %40, %cst_18 [1, 2] : vector<1x8x1xf32> to vector<1xf32>
      %42 = vector.shape_cast %41 : vector<1xf32> to vector<1x1x1xf32>
      %43 = vector.extract %42[0, 0, 0] : f32 from vector<1x1x1xf32>
      %44 = vector.broadcast %43 : f32 to vector<1x1x1xf32>
      %c0_19 = arith.constant 0 : index
      %c0_20 = arith.constant 0 : index
      %c0_21 = arith.constant 0 : index
      %45 = vector.load %arg4[%c0_19, %c0_20, %c0_21] : memref<1x1x1xf32, #tpu.memory_space<vmem>>, vector<1x1x1xf32>
      tpu.vector_store %arg4[%c0_19, %c0_20, %c0_21], %44 {strides = array<i32>} : memref<1x1x1xf32, #tpu.memory_space<vmem>>, vector<1x1x1xf32>,
    } else {
    }
    return
  }
  func.func @transform_0(%arg0: i32, %arg1: i32) -> (i32, i32, i32) {
    %c0_i32 = arith.constant 0 : i32
    %c0_i32_0 = arith.constant 0 : i32
    return %arg0, %c0_i32, %arg1 : i32, i32, i32
  }
  func.func @transform_1(%arg0: i32, %arg1: i32) -> (i32, i32, i32) {
    %c0_i32 = arith.constant 0 : i32
    %c0_i32_0 = arith.constant 0 : i32
    return %arg0, %c0_i32, %arg1 : i32, i32, i32
  }
  func.func @transform_2(%arg0: i32, %arg1: i32) -> (i32, i32, i32) {
    %c0_i32 = arith.constant 0 : i32
    %c0_i32_0 = arith.constant 0 : i32
    %c0_i32_1 = arith.constant 0 : i32
    return %arg0, %c0_i32, %c0_i32_0 : i32, i32, i32
  }
}

</mosaic_0001>

<llo_original>
// kernel: tpu_custom_call.1
$region0: #{tpu_custom_call.1}
  #allocation0 [shape = 'u32[]', space=smem, size = 0x4, offset = 0x4, fixed_abs, tag = 'smem constant byte address 0x4 - core index']
  #allocation1 [shape = 'u32[144,128]{1,0:T(1,128)}', space=vmem, size = 0x12000, scoped, tag = 'internal scratch']
  #allocation2 [shape = 'f32[8,128]{1,0:T(8,128)}', space=vmem, size = 0x1000, scoped, tag = 'scratch operand']
  %s0 = inlined_call_operand.hbm [shape: f32[2,8,256], index: 0, kind: input, shape index: {}]
  %s1 = inlined_call_operand.hbm [shape: f32[2,1,256], index: 1, kind: input, shape index: {}]
  %s2 = inlined_call_operand.vmem [shape: f32[2,1,1], index: 2, kind: output, shape index: {}]
  %s3 = sld [smem:[#allocation0]]
  $region57: #{tpu_custom_call.1} parent=0
    _
  %s5 = ssub.s32 1, %s3
  %s6 = scalar_select 0, %s5, %s3
  $region1: #{tpu_custom_call.1} parent=0
    #allocation3 [shape = 'u8[16384]{0}', space=vmem, size = 0x4000, scoped, tag = 'input window, operand 0']
    #allocation4 [shape = 's32[2]{0}', space=sflag, size = 0x8, scoped, tag = 'scoped memory for tpu_custom_call.1']
    #allocation5 [shape = 'u8[2048]{0}', space=vmem, size = 0x800, scoped, tag = 'input window, operand 1']
    #allocation6 [shape = 's32[2]{0}', space=sflag, size = 0x8, scoped, tag = 'scoped memory for tpu_custom_call.1']
    %7 = vsyncpa [#allocation4], 0
    %s8 = scalar_lea.sflag [#allocation4], 1
    %9 = vsyncpa %s8, 0
    %10 = vsyncpa [#allocation6], 0
    %s11 = scalar_lea.sflag [#allocation6], 1
    %12 = vsyncpa %s11, 0
    loop: start=0, step=1, limit=4
    $region2: #{tpu_custom_call.1} parent=1 // loop_pre_header
      _
    $region3: #{tpu_custom_call.1} parent=1 // loop_header
      %s14 = sphi 0, %s18
      %p15 = scmp.ge.s32.totalorder %s14, 4
      %s21 = sphi 0, %s33
      %s22 = sphi 0, %s29
      %s23 = sphi 0, %s21
      %s24 = sphi 0, %s22
      %s25 = sphi 0, %s23
      %s26 = sphi 0, %s24
      %s38 = sphi 0, %s40
      %s41 = sphi 0, %s38
      %s42 = sphi 0, %s41
      %s58 = sphi 0, %s42
      %s66 = sphi 0, %s68
      %s69 = sphi 0, %s66
      %s70 = sphi 0, %s69
      %s86 = sphi 0, %s70
      %s92 = sphi 0, %s94
      %s95 = sphi 0, %s92
      %s96 = sphi 0, %s95
      %s112 = sphi 0, %s96
    $region4: #{tpu_custom_call.1} parent=1 // loop_header_branch
      %17 = sbr.rel (%p15) target = $region8
    $region5: #{tpu_custom_call.1} parent=1 // loop_body
      %s19 = ssub.s32 %s14, 1
      %s20 = ssub.s32 %s14, 2
      %s27 = sadd.s32 1, %s22
      %p28 = scmp.ge.s32.totalorder %s27, 1
      %s29 = scalar_select %p28, 0, %s27
      %s30 = sadd.s32 1, %s21
      %s31 = scalar_select %p28, %s30, %s21
      %p32 = scmp.ge.s32.totalorder %s31, 2
      %s33 = scalar_select %p32, 0, %s31
      %s34 = ssub.s32 %s21, %s33
      %s35 = ssub.s32 %s22, %s29
      %s36 = sor.u32 %s34, %s35
      %p37 = scmp.eq.s32.totalorder %s36, 0
      %s39 = sadd.s32 %s38, 1
      %s40 = scalar_select %p37, %s38, %s39
      %p43 = pneg %p37
      %p44 = scmp.eq.s32.totalorder %s14, 1
      %p45 = por %p43, %p44
      %p46 = scmp.ne.s32.totalorder %s38, %s41
      %p47 = scmp.eq.s32.totalorder %s14, 0
      %p48 = por %p46, %p47
      %p49 = scmp.ne.s32.totalorder %s38, %s41
      %p50 = scmp.eq.s32.totalorder %s19, 1
      %p51 = por %p49, %p50
      %p52 = scmp.ne.s32.totalorder %s41, %s42
      %p53 = scmp.eq.s32.totalorder %s19, 0
      %p54 = por %p52, %p53
      %p55 = scmp.ne.s32.totalorder %s41, %s42
      %p56 = scmp.eq.s32.totalorder %s20, 1
      %p57 = por %p55, %p56
      %p59 = scmp.ne.s32.totalorder %s42, %s58
      %p60 = scmp.eq.s32.totalorder %s20, 0
      %p61 = por %p59, %p60
      %s62 = ssub.s32 %s21, %s33
      %s63 = ssub.s32 %s22, %s29
      %s64 = sor.u32 %s62, %s63
      %p65 = scmp.eq.s32.totalorder %s64, 0
      %s67 = sadd.s32 %s66, 1
      %s68 = scalar_select %p65, %s66, %s67
      %p71 = pneg %p65
      %p72 = scmp.eq.s32.totalorder %s14, 1
      %p73 = por %p71, %p72
      %p74 = scmp.ne.s32.totalorder %s66, %s69
      %p75 = scmp.eq.s32.totalorder %s14, 0
      %p76 = por %p74, %p75
      %p77 = scmp.ne.s32.totalorder %s66, %s69
      %p78 = scmp.eq.s32.totalorder %s19, 1
      %p79 = por %p77, %p78
      %p80 = scmp.ne.s32.totalorder %s69, %s70
      %p81 = scmp.eq.s32.totalorder %s19, 0
      %p82 = por %p80, %p81
      %p83 = scmp.ne.s32.totalorder %s69, %s70
      %p84 = scmp.eq.s32.totalorder %s20, 1
      %p85 = por %p83, %p84
      %p87 = scmp.ne.s32.totalorder %s70, %s86
      %p88 = scmp.eq.s32.totalorder %s20, 0
      %p89 = por %p87, %p88
      %s90 = ssub.s32 %s21, %s33
      %p91 = scmp.eq.s32.totalorder %s90, 0
      %s93 = sadd.s32 %s92, 1
      %s94 = scalar_select %p91, %s92, %s93
      %p97 = pneg %p91
      %p98 = scmp.eq.s32.totalorder %s14, 1
      %p99 = por %p97, %p98
      %p100 = scmp.ne.s32.totalorder %s92, %s95
      %p101 = scmp.eq.s32.totalorder %s14, 0
      %p102 = por %p100, %p101
      %p103 = scmp.ne.s32.totalorder %s92, %s95
      %p104 = scmp.eq.s32.totalorder %s19, 1
      %p105 = por %p103, %p104
      %p106 = scmp.ne.s32.totalorder %s95, %s96
      %p107 = scmp.eq.s32.totalorder %s19, 0
      %p108 = por %p106, %p107
      %p109 = scmp.ne.s32.totalorder %s95, %s96
      %p110 = scmp.eq.s32.totalorder %s20, 1
      %p111 = por %p109, %p110
      %p113 = scmp.ne.s32.totalorder %s96, %s112
      %p114 = scmp.eq.s32.totalorder %s20, 0
      %p115 = por %p113, %p114
      %p116 = scmp.le.s32.totalorder 1, %s14
      %p117 = scmp.lt.s32.totalorder %s14, 3
      %p118 = pnand %p116, %p117
      %p119 = pneg %p118
      // Predicated region
      $region9: #{tpu_custom_call.1} parent=5 // pred_check
        _
      $region10: #{tpu_custom_call.1} parent=5 // pred_check_branch
        %121 = sbr.rel (%p118) target = $region12
      $region11: #{tpu_custom_call.1} parent=5 // pred_region
        %s122 = ssub.s32 %s14, 1
      $region12: #{tpu_custom_call.1} parent=5 // pred_fallthru
        _
      %p123 = scmp.lt.s32.totalorder %s14, 2
      // Predicated region
      $region13: #{tpu_custom_call.1} parent=5 // pred_check
        %p124 = pneg %p123
      $region14: #{tpu_custom_call.1} parent=5 // pred_check_branch
        %126 = sbr.rel (%p124) target = $region16
      $region15: #{tpu_custom_call.1} parent=5 // pred_region
        // Predicated region
        $region17: #{tpu_custom_call.1} parent=15 // pred_check
          %p127 = pneg %p48
        $region18: #{tpu_custom_call.1} parent=15 // pred_check_branch
          %129 = sbr.rel (%p127) target = $region20
        $region19: #{tpu_custom_call.1} parent=15 // pred_region
          %s130 = sand.u32 %s38, 1
          %s131 = scalar_lea.sflag [#allocation4], %s130
          %s132 = sand.u32 %s38, 1
          %s133 = smul.addr %s132, 16
          %s134 = scalar_lea.vmem [#allocation3], %s133
          %s135 = smul.u32 2, %s22
          %s137 = ssub.s32 256, 256
          %138 = vsyncadd %s131, %s137
          %s139 = smul.addr %s21, 2
          %s140 = sadd.s32 %s135, %s139
          %s141 = smul.addr %s140, 128
          %s142 = scalar_lea.hbm %s0, %s141
          %s144 = sshll.u32 %s134, 4
          %s145 = int_to_ptr.vmem [resolvable:$true] %s144
          %147 = dma.hbm_to_vmem [thread:$0]  %s142, 256, %s145, %s131
        $region20: #{tpu_custom_call.1} parent=15 // pred_fallthru
          _
        // Predicated region
        $region21: #{tpu_custom_call.1} parent=15 // pred_check
          %p148 = pneg %p76
        $region22: #{tpu_custom_call.1} parent=15 // pred_check_branch
          %150 = sbr.rel (%p148) target = $region24
        $region23: #{tpu_custom_call.1} parent=15 // pred_region
          %s151 = sand.u32 %s66, 1
          %s152 = scalar_lea.sflag [#allocation6], %s151
          %s153 = sand.u32 %s66, 1
          %s154 = smul.addr %s153, 2
          %s155 = scalar_lea.vmem [#allocation5], %s154
          %s156 = smul.u32 2, %s22
          %s158 = ssub.s32 32, 32
          %159 = vsyncadd %s152, %s158
          %s160 = smul.addr %s21, 2
          %s161 = sadd.s32 %s156, %s160
          %s162 = smul.addr %s161, 16
          %s163 = scalar_lea.hbm %s1, %s162
          %s165 = sshll.u32 %s155, 4
          %s166 = int_to_ptr.vmem [resolvable:$true] %s165
          %168 = dma.hbm_to_vmem [thread:$0]  %s163, 32, %s166, %s152
        $region24: #{tpu_custom_call.1} parent=15 // pred_fallthru
          _
      $region16: #{tpu_custom_call.1} parent=5 // pred_fallthru
        _
      %p169 = scmp.le.s32.totalorder 1, %s14
      %p170 = scmp.lt.s32.totalorder %s14, 3
      %p171 = pnand %p169, %p170
      %p172 = pneg %p171
      // Predicated region
      $region25: #{tpu_custom_call.1} parent=5 // pred_check
        _
      $region26: #{tpu_custom_call.1} parent=5 // pred_check_branch
        %174 = sbr.rel (%p171) target = $region28
      $region27: #{tpu_custom_call.1} parent=5 // pred_region
        %s175 = ssub.s32 %s14, 1
        %s176 = sand.u32 %s41, 1
        %s177 = scalar_lea.sflag [#allocation4], %s176
        %s178 = sand.u32 %s41, 1
        %s179 = smul.addr %s178, 16
        %s180 = scalar_lea.vmem [#allocation3], %s179
        // Predicated region
        $region29: #{tpu_custom_call.1} parent=27 // pred_check
          %p181 = pneg %p54
        $region30: #{tpu_custom_call.1} parent=27 // pred_check_branch
          %183 = sbr.rel (%p181) target = $region32
        $region31: #{tpu_custom_call.1} parent=27 // pred_region
          %184 = dma.done %s177, 256
        $region32: #{tpu_custom_call.1} parent=27 // pred_fallthru
          _
        %s185 = sand.u32 %s69, 1
        %s186 = scalar_lea.sflag [#allocation6], %s185
        %s187 = sand.u32 %s69, 1
        %s188 = smul.addr %s187, 2
        %s189 = scalar_lea.vmem [#allocation5], %s188
        // Predicated region
        $region33: #{tpu_custom_call.1} parent=27 // pred_check
          %p190 = pneg %p82
        $region34: #{tpu_custom_call.1} parent=27 // pred_check_branch
          %192 = sbr.rel (%p190) target = $region36
        $region35: #{tpu_custom_call.1} parent=27 // pred_region
          %193 = dma.done %s186, 32
        $region36: #{tpu_custom_call.1} parent=27 // pred_fallthru
          _
        %s194 = sand.u32 %s41, 1
        %s195 = scalar_lea.sflag [#allocation4], %s194
        %s196 = sand.u32 %s41, 1
        %s197 = smul.addr %s196, 16
        %s198 = scalar_lea.vmem [#allocation3], %s197
        %p199 = pneg %p54
        %p200 = pneg %p51
        %s201 = sand.u32 %s69, 1
        %s202 = scalar_lea.sflag [#allocation6], %s201
        %s203 = sand.u32 %s69, 1
        %s204 = smul.addr %s203, 2
        %s205 = scalar_lea.vmem [#allocation5], %s204
        %p206 = pneg %p82
        %p207 = pneg %p79
        %p208 = pneg %p108
        %p209 = pneg %p105
        %p210 = scmp.lt.s32.totalorder %s23, 1
        %s211 = scalar_select %p210, %s23, 1
        %s212 = scalar_lea.vmem %s2, %s211
        %s213 = smul.u32 2, %s24
        %s214 = smul.u32 2, %s24
        %p215 = scmp.lt.s32.totalorder %s23, 1
        %s216 = scalar_select %p215, %s23, 1
        %s217 = scalar_lea.vmem %s2, %s216
        %p218 = scmp.eq.s32.totalorder %s24, 0
        // Predicated region
        $region37: #{tpu_custom_call.1} parent=27 // pred_check
          %p219 = pneg %p218
        $region38: #{tpu_custom_call.1} parent=27 // pred_check_branch
          %221 = sbr.rel (%p219) target = $region40
        $region39: #{tpu_custom_call.1} parent=27 // pred_region
          %222 = vst [vmem:[#allocation2] sm:$0xff] 0.0
        $region40: #{tpu_custom_call.1} parent=27 // pred_fallthru
          _
        %v223 = vld [vmem:[#allocation2] sm:$0xff]
        %v224 = vld [vmem:[%s180] sm:$0xff]
        %v225 = vld [vmem:[%s189] sm:$0x1]
        %v227 = vlaneseq
        %v228 = vshrl.u32 %v227, 7
        %v229 = vsub.s32 0, %v228
        %v230 = vrot.slane %v225, %v229
        %v232 = vmul.f32 %v224, %v230
        %v233 = vadd.f32 %v223, %v232
        %s234 = scalar_lea.vmem %s180, 8 [#allocation3]
        %v235 = vld [vmem:[%s234] sm:$0xff]
        %s236 = scalar_lea.vmem %s189, 1 [#allocation5]
        %v237 = vld [vmem:[%s236] sm:$0x1]
        %v239 = vlaneseq
        %v240 = vshrl.u32 %v239, 7
        %v241 = vsub.s32 0, %v240
        %v242 = vrot.slane %v237, %v241
        %v244 = vmul.f32 %v235, %v242
        %v245 = vadd.f32 %v233, %v244
        %246 = vst [vmem:[#allocation2] sm:$0xff] %v245
        // Predicated region
        $region41: #{tpu_custom_call.1} parent=27 // pred_check
          %p247 = pneg %p218
        $region42: #{tpu_custom_call.1} parent=27 // pred_check_branch
          %249 = sbr.rel (%p247) target = $region44
        $region43: #{tpu_custom_call.1} parent=27 // pred_region
          %v250 = vld [vmem:[#allocation2] sm:$0xff]
          %251 = vadd.xlane.f32.xlu0 %v250
          %v252 = vpop.xlane.xlu0 %251
          %v253 = vlaneseq
          %v254 = vshrl.u32 %v253, 7
          %vm255 = vcmp.lt.s32.totalorder %v254, 7
          %v256 = vsel %vm255, 1, 0
          %v257 = vcvt.s32.f32 %v256
          %v258 = vsub.f32 %v257, %v252
          %v259 = vand.u32 2147483647, %v258
          %vm260 = vcmask 7168
          %v261 = vsel %vm260, %v259, 0.0
          %262 = vadd.xlane.f32.xlu0 %v261
          %v263 = vpop.xlane.xlu0 %262
          %v264 = vrot.slane %v263, 4
          %v265 = vadd.f32 %v263, %v264
          %v266 = vrot.slane %v265, 2
          %v267 = vadd.f32 %v265, %v266
          %v268 = vrot.slane %v267, 1
          %v269 = vadd.f32 %v267, %v268
          %s270 = vtos %v269
          %v271 = vstv %s270
          %vm272 = vcmask 0
          %273 = vst.msk [vmem:[%s217] sm:$0x1] %vm272, %v271
        $region44: #{tpu_custom_call.1} parent=27 // pred_fallthru
          _
        %p274 = scmp.lt.s32.totalorder %s23, 1
        %s275 = scalar_select %p274, %s23, 1
        %s276 = scalar_lea.vmem %s2, %s275
        // Predicated region
        $region45: #{tpu_custom_call.1} parent=27 // pred_check
          %p277 = pneg %p105
        $region46: #{tpu_custom_call.1} parent=27 // pred_check_branch
          %279 = sbr.rel (%p277) target = $region48
        $region47: #{tpu_custom_call.1} parent=27 // pred_region
          _
        $region48: #{tpu_custom_call.1} parent=27 // pred_fallthru
          _
      $region28: #{tpu_custom_call.1} parent=5 // pred_fallthru
        _
      %p280 = scmp.le.s32.totalorder 2, %s14
      // Predicated region
      $region49: #{tpu_custom_call.1} parent=5 // pred_check
        %p281 = pneg %p280
      $region50: #{tpu_custom_call.1} parent=5 // pred_check_branch
        %283 = sbr.rel (%p281) target = $region52
      $region51: #{tpu_custom_call.1} parent=5 // pred_region
        %s284 = ssub.s32 %s14, 2
        // Predicated region
        $region53: #{tpu_custom_call.1} parent=51 // pred_check
          %p285 = pneg %p111
        $region54: #{tpu_custom_call.1} parent=51 // pred_check_branch
          %287 = sbr.rel (%p285) target = $region56
        $region55: #{tpu_custom_call.1} parent=51 // pred_region
          %p288 = scmp.lt.s32.totalorder %s25, 1
          %s289 = scalar_select %p288, %s25, 1
          %s290 = scalar_lea.vmem %s2, %s289
        $region56: #{tpu_custom_call.1} parent=51 // pred_fallthru
          _
      $region52: #{tpu_custom_call.1} parent=5 // pred_fallthru
        _
    $region6: #{tpu_custom_call.1} parent=1 // loop_footer
      %s18 = sadd.s32 1, %s14
    $region7: #{tpu_custom_call.1} parent=1 // loop_footer_branch
      %13 = sbr.rel target = $region3
    $region8: #{tpu_custom_call.1} parent=1 // loop_exit
      _
    %291 = vsyncpa [#allocation4], 1
    %s292 = scalar_lea.sflag [#allocation4], 1
    %293 = vsyncpa %s292, 1
    %294 = vsyncpa [#allocation6], 1
    %s295 = scalar_lea.sflag [#allocation6], 1
    %296 = vsyncpa %s295, 1

</llo_original>
